<compile_context>
chip_gen: v6e
topology: v6e:2x2x1
jax: 0.10.0
libtpu: 0.0.40
codegen_flags: <defaults>
</compile_context>

<pallas_src>
import functools

import jax
import jax.numpy as jnp
from jax.experimental import pallas as pl
from jax.experimental.pallas import tpu as pltpu


def _round_up(x: int, m: int) -> int:
    return ((x + m - 1) // m) * m


def _pick_tile(total: int, target: int, quantum: int) -> int:
    """Largest multiple of `quantum` <= target dividing `total` (searched down to
    ~target/2); else just target (caller pads `total` up)."""
    if total <= target:
        return total
    t = max(quantum, (target // quantum) * quantum)
    cand = t
    while cand >= max(quantum, t // 2):
        if total % cand == 0:
            return cand
        cand -= quantum
    return t


def _hw_params():
    """(usable VMEM budget bytes, # TensorCores per chip) with safe fallbacks."""
    phys_vmem = 128 * 1024 * 1024
    n_tc = 1
    try:
        info = pltpu.get_tpu_info()
        phys_vmem = int(getattr(info, "vmem_capacity_bytes", phys_vmem))
        for attr in ("num_cores", "core_count", "num_tensorcores", "tensorcore_count"):
            v = getattr(info, attr, None)
            if v:
                n_tc = int(v)
                break
    except Exception:
        pass
    if phys_vmem <= 64 * 1024 * 1024:
        budget = phys_vmem - (12 << 20)     # v7x: leave Mosaic scratch headroom
    else:
        budget = phys_vmem - (24 << 20)     # v5e/v6e: don't strand half of 128 MiB
    return max(budget, 24 << 20), max(n_tc, 1)


# ---------------------------------------------------------------------------
# Kernels
# ---------------------------------------------------------------------------
def ffn_kernel_resident(x_ref, w1_ref, b1_ref, w2_ref, b2_ref, o_ref):
    """Grid = (m_tiles,). Weights VMEM-resident (constant index_map); no accumulator."""
    h = jnp.dot(x_ref[...], w1_ref[...], preferred_element_type=jnp.float32)
    h = jnp.maximum(h + b1_ref[...], 0.0)
    out = jnp.dot(h.astype(w2_ref.dtype), w2_ref[...],
                  preferred_element_type=jnp.float32)
    o_ref[...] = (out + b2_ref[...]).astype(o_ref.dtype)


def ffn_kernel_streamed(x_ref, w1_ref, b1_ref, w2_ref, b2_ref, o_ref, acc_ref):
    """Grid = (m_tiles, ff_tiles); ff is the inner 'arbitrary' reduction."""
    k = pl.program_id(1)

    @pl.when(k == 0)
    def _init():
        acc_ref[...] = jnp.zeros_like(acc_ref)

    h = jnp.dot(x_ref[...], w1_ref[...], preferred_element_type=jnp.float32)
    h = jnp.maximum(h + b1_ref[...], 0.0)
    acc_ref[...] += jnp.dot(h.astype(w2_ref.dtype), w2_ref[...],
                            preferred_element_type=jnp.float32)

    @pl.when(k == pl.num_programs(1) - 1)
    def _finalize():
        o_ref[...] = (acc_ref[...] + b2_ref[...]).astype(o_ref.dtype)


# ---------------------------------------------------------------------------
# Wrapper
# ---------------------------------------------------------------------------
def feed_forward_block(x, w1, b1, w2, b2, *, tm: int | None = None,
                       tk_ff: int | None = None, compute_dtype=None):
    """x: [B, S, d_model]; w1: [d_model, d_ff]; b1: [d_ff];
    w2: [d_ff, d_model]; b2: [d_model]."""
    B, S, d_model = x.shape
    d_ff = w1.shape[1]
    M = B * S
    out_dtype = x.dtype

    if compute_dtype is not None:
        # Optional one-time cast (e.g. bf16) for MXU-native throughput; f32
        # accumulation and f32 bias/ReLU are preserved inside the kernel.
        x = x.astype(compute_dtype)
        w1 = w1.astype(compute_dtype)
        w2 = w2.astype(compute_dtype)

    in_bytes = jnp.dtype(x.dtype).itemsize
    w_bytes = jnp.dtype(w1.dtype).itemsize

    vmem_budget, n_tc = _hw_params()

    # ---- feature dims: lane-dense multiples of 128 ---------------------------
    d_model_p = _round_up(d_model, 128)
    d_ff_128 = _round_up(d_ff, 128)

    # ---- token tile ----------------------------------------------------------
    tm_target = 512 if tm is None else tm
    M_16 = _round_up(M, 16)
    if M_16 <= tm_target:
        tm_sel = M_16
        M_p = M_16
    else:
        M_p = _round_up(M, 256)
        tm_sel = _pick_tile(M_p, tm_target, 256)
        M_p = _round_up(M, tm_sel)
    # Only force an M split on multi-TensorCore chips (v7x megacore sharding);
    # on single-TC v5e/v6e splitting just doubles weight traffic.
    if n_tc > 1 and M_p // tm_sel < n_tc and M > 16:
        tm_sel = max(16, _round_up((M + n_tc - 1) // n_tc, 16))
        M_p = _round_up(M, tm_sel)
    n_m_tiles = M_p // tm_sel

    # ---- d_ff tile: keep weights resident when they fit ----------------------
    def resident_bytes(tm_, dff_):
        return (2 * tm_ * d_model_p * in_bytes          # x tile (double-buffered)
                + 2 * tm_ * d_model_p * in_bytes        # out tile
                + 2 * d_model_p * dff_ * w_bytes        # W1 buffers
                + 2 * dff_ * d_model_p * w_bytes        # W2 buffers
                + tm_ * dff_ * 4                        # f32 h intermediate
                + 2 * 8 * (dff_ + 2 * d_model_p) * 4)   # biases (sublane-padded)

    def streamed_bytes(tm_, tk_):
        return resident_bytes(tm_, tk_) + tm_ * d_model_p * 4   # + f32 acc scratch

    use_resident = ((tk_ff is None or tk_ff >= d_ff_128)
                    and resident_bytes(tm_sel, d_ff_128) <= vmem_budget)

    if use_resident:
        tk_sel = d_ff_128
        d_ff_p = d_ff_128
        grid = (n_m_tiles,)
        footprint = resident_bytes(tm_sel, d_ff_p)
    else:
        tk_target = tk_ff if tk_ff is not None else (
            1024 if vmem_budget > 64 * 1024 * 1024 else 512)
        tk_sel = min(_pick_tile(d_ff_128, tk_target, 128), d_ff_128)
        # Shrink until the working set fits the per-generation VMEM budget.
        while tk_sel > 128 and streamed_bytes(tm_sel, tk_sel) > vmem_budget:
            tk_sel = max(128, _round_up(tk_sel // 2, 128))
        while tm_sel > 16 and streamed_bytes(tm_sel, tk_sel) > vmem_budget:
            tm_sel = max(16, _round_up(tm_sel // 2, 16))
            M_p = _round_up(M, tm_sel)
        # TODO(synk): for extreme d_model a d_model (N) tile would be needed too.
        d_ff_p = _round_up(d_ff_128, tk_sel)
        n_m_tiles = M_p // tm_sel
        grid = (n_m_tiles, d_ff_p // tk_sel)
        footprint = streamed_bytes(tm_sel, tk_sel)

    vmem_limit = int(min(vmem_budget, max(footprint + (4 << 20), 32 << 20)))

    # ---- padding (zero padding is exact; skipped when not needed) ------------
    x2d = x.reshape(M, d_model)
    if M_p != M or d_model_p != d_model:
        x2d = jnp.pad(x2d, ((0, M_p - M), (0, d_model_p - d_model)))
    w1_p = w1 if (d_model_p == d_model and d_ff_p == d_ff) else \
        jnp.pad(w1, ((0, d_model_p - d_model), (0, d_ff_p - d_ff)))
    w2_p = w2 if (d_ff_p == d_ff and d_model_p == d_model) else \
        jnp.pad(w2, ((0, d_ff_p - d_ff), (0, d_model_p - d_model)))
    b1_p = jnp.pad(b1, (0, d_ff_p - d_ff)).reshape(1, d_ff_p).astype(jnp.float32)
    b2_p = jnp.pad(b2, (0, d_model_p - d_model)).reshape(1, d_model_p).astype(jnp.float32)

    w_stream_factor = 1 if use_resident else n_m_tiles
    cost = pl.CostEstimate(
        flops=4 * M_p * d_model_p * d_ff_p,
        transcendentals=0,
        bytes_accessed=(2 * M_p * d_model_p * in_bytes
                        + w_stream_factor * (w1_p.size + w2_p.size) * w_bytes
                        + (b1_p.size + b2_p.size) * 4),
    )

    out_shape = jax.ShapeDtypeStruct((M_p, d_model_p), out_dtype)

    if use_resident:
        out2d = pl.pallas_call(
            ffn_kernel_resident,
            out_shape=out_shape,
            grid_spec=pltpu.PrefetchScalarGridSpec(
                num_scalar_prefetch=0,
                grid=grid,
                in_specs=[
                    pl.BlockSpec((tm_sel, d_model_p), lambda i: (i, 0)),    # x tile
                    pl.BlockSpec((d_model_p, d_ff_p), lambda i: (0, 0)),    # W1 (resident)
                    pl.BlockSpec((1, d_ff_p), lambda i: (0, 0)),            # b1
                    pl.BlockSpec((d_ff_p, d_model_p), lambda i: (0, 0)),    # W2 (resident)
                    pl.BlockSpec((1, d_model_p), lambda i: (0, 0)),         # b2
                ],
                out_specs=pl.BlockSpec((tm_sel, d_model_p), lambda i: (i, 0)),
            ),
            compiler_params=pltpu.CompilerParams(
                dimension_semantics=("parallel",),
                vmem_limit_bytes=vmem_limit,
            ),
            cost_estimate=cost,
        )(x2d, w1_p, b1_p, w2_p, b2_p)
    else:
        out2d = pl.pallas_call(
            ffn_kernel_streamed,
            out_shape=out_shape,
            grid_spec=pltpu.PrefetchScalarGridSpec(
                num_scalar_prefetch=0,
                grid=grid,
                in_specs=[
                    pl.BlockSpec((tm_sel, d_model_p), lambda i, k: (i, 0)),    # x tile
                    pl.BlockSpec((d_model_p, tk_sel), lambda i, k: (0, k)),    # W1 slice
                    pl.BlockSpec((1, tk_sel), lambda i, k: (0, k)),            # b1 slice
                    pl.BlockSpec((tk_sel, d_model_p), lambda i, k: (k, 0)),    # W2 slice
                    pl.BlockSpec((1, d_model_p), lambda i, k: (0, 0)),         # b2
                ],
                out_specs=pl.BlockSpec((tm_sel, d_model_p), lambda i, k: (i, 0)),
                scratch_shapes=[pltpu.VMEM((tm_sel, d_model_p), jnp.float32)],
            ),
            compiler_params=pltpu.CompilerParams(
                dimension_semantics=("parallel", "arbitrary"),
                vmem_limit_bytes=vmem_limit,
            ),
            cost_estimate=cost,
        )(x2d, w1_p, b1_p, w2_p, b2_p)

    return out2d[:M, :d_model].reshape(B, S, d_model)


if __name__ == "__main__":
    # Small shapes consistent with the module: batch=2, seq=8, d_model=32, d_ff=64
    B, S, d_model, d_ff = 2, 8, 32, 64

    key = jax.random.PRNGKey(0)
    kx, kw1, kb1, kw2, kb2 = jax.random.split(key, 5)

    x = jax.random.normal(kx, (B, S, d_model), dtype=jnp.float32)
    # Deterministic "Linear" params, stored as (in, out) for the kernel
    # (a torch nn.Linear weight would be transposed once here).
    w1 = jax.random.normal(kw1, (d_model, d_ff), dtype=jnp.float32) * 0.02
    b1 = jax.random.normal(kb1, (d_ff,), dtype=jnp.float32) * 0.02
    w2 = jax.random.normal(kw2, (d_ff, d_model), dtype=jnp.float32) * 0.02
    b2 = jax.random.normal(kb2, (d_model,), dtype=jnp.float32) * 0.02

    fwd = jax.jit(functools.partial(feed_forward_block))
    out = fwd(x, w1, b1, w2, b2)
    jax.block_until_ready(out)

    # Pure-JAX reference (dropout = identity in eval mode).
    ref = jnp.maximum(x @ w1 + b1, 0.0) @ w2 + b2
    assert out.shape == (B, S, d_model)
    assert jnp.allclose(out, ref, atol=1e-5, rtol=1e-5)

    print("KERNEL_OK")
</pallas_src>

<mosaic_0001>
module attributes {stable_mosaic.version = 11 : i64} {
  func.func @ffn_kernel_resident(%arg0: i32, %arg1: memref<16x128xf32, #tpu.memory_space<vmem>>, %arg2: memref<128x128xf32, #tpu.memory_space<vmem>>, %arg3: memref<1x128xf32, #tpu.memory_space<vmem>>, %arg4: memref<128x128xf32, #tpu.memory_space<vmem>>, %arg5: memref<1x128xf32, #tpu.memory_space<vmem>>, %arg6: memref<16x128xf32, #tpu.memory_space<vmem>>) attributes {dimension_semantics = [#tpu.dimension_semantics<parallel>], iteration_bounds = array<i64: 1>, scalar_prefetch = 0 : i64, scratch_operands = 0 : i64, tpu.core_type = #tpu.core_type<tc>, window_params = [{transform_indices = @transform_0, window_bounds = array<i64: 16, 128>}, {pipeline_mode = #tpu.pipeline_mode<synchronous>, transform_indices = @transform_1, window_bounds = array<i64: 128, 128>}, {pipeline_mode = #tpu.pipeline_mode<synchronous>, transform_indices = @transform_2, window_bounds = array<i64: 1, 128>}, {pipeline_mode = #tpu.pipeline_mode<synchronous>, transform_indices = @transform_3, window_bounds = array<i64: 128, 128>}, {pipeline_mode = #tpu.pipeline_mode<synchronous>, transform_indices = @transform_4, window_bounds = array<i64: 1, 128>}, {transform_indices = @transform_5, window_bounds = array<i64: 16, 128>}]} {
    %c0 = arith.constant 0 : index
    %c0_0 = arith.constant 0 : index
    %0 = vector.load %arg1[%c0, %c0_0] : memref<16x128xf32, #tpu.memory_space<vmem>>, vector<16x128xf32>
    %c0_1 = arith.constant 0 : index
    %c0_2 = arith.constant 0 : index
    %1 = vector.load %arg2[%c0_1, %c0_2] : memref<128x128xf32, #tpu.memory_space<vmem>>, vector<128x128xf32>
    %cst = arith.constant dense<0.000000e+00> : vector<16x128xf32>
    %2 = tpu.matmul %0, %1, %cst {dimension_numbers = #tpu.dot_dimension_numbers<[1], [0], [0], [1], [0, 0, 1, 1], [], []>} : vector<16x128xf32>, vector<128x128xf32>, vector<16x128xf32> -> vector<16x128xf32>
    %c0_3 = arith.constant 0 : index
    %c0_4 = arith.constant 0 : index
    %3 = vector.load %arg3[%c0_3, %c0_4] : memref<1x128xf32, #tpu.memory_space<vmem>>, vector<1x128xf32>
    %4 = vector.broadcast %3 : vector<1x128xf32> to vector<16x128xf32>
    %5 = arith.addf %2, %4 : vector<16x128xf32>
    %cst_5 = arith.constant 0.000000e+00 : f32
    %6 = vector.broadcast %cst_5 : f32 to vector<16x128xf32>
    %7 = arith.maximumf %5, %6 : vector<16x128xf32>
    %c0_6 = arith.constant 0 : index
    %c0_7 = arith.constant 0 : index
    %8 = vector.load %arg4[%c0_6, %c0_7] : memref<128x128xf32, #tpu.memory_space<vmem>>, vector<128x128xf32>
    %cst_8 = arith.constant dense<0.000000e+00> : vector<16x128xf32>
    %9 = tpu.matmul %7, %8, %cst_8 {dimension_numbers = #tpu.dot_dimension_numbers<[1], [0], [0], [1], [0, 0, 1, 1], [], []>} : vector<16x128xf32>, vector<128x128xf32>, vector<16x128xf32> -> vector<16x128xf32>
    %c0_9 = arith.constant 0 : index
    %c0_10 = arith.constant 0 : index
    %10 = vector.load %arg5[%c0_9, %c0_10] : memref<1x128xf32, #tpu.memory_space<vmem>>, vector<1x128xf32>
    %11 = vector.broadcast %10 : vector<1x128xf32> to vector<16x128xf32>
    %12 = arith.addf %9, %11 : vector<16x128xf32>
    %c0_11 = arith.constant 0 : index
    %c0_12 = arith.constant 0 : index
    %13 = vector.load %arg6[%c0_11, %c0_12] : memref<16x128xf32, #tpu.memory_space<vmem>>, vector<16x128xf32>
    tpu.vector_store %arg6[%c0_11, %c0_12], %12 {strides = array<i32>} : memref<16x128xf32, #tpu.memory_space<vmem>>, vector<16x128xf32>,
    return
  }
  func.func @transform_0(%arg0: i32) -> (i32, i32) {
    %c0_i32 = arith.constant 0 : i32
    %c0_i32_0 = arith.constant 0 : i32
    return %arg0, %c0_i32 : i32, i32
  }
  func.func @transform_1(%arg0: i32) -> (i32, i32) {
    %c0_i32 = arith.constant 0 : i32
    %c0_i32_0 = arith.constant 0 : i32
    %c0_i32_1 = arith.constant 0 : i32
    return %c0_i32, %c0_i32_0 : i32, i32
  }
  func.func @transform_2(%arg0: i32) -> (i32, i32) {
    %c0_i32 = arith.constant 0 : i32
    %c0_i32_0 = arith.constant 0 : i32
    %c0_i32_1 = arith.constant 0 : i32
    return %c0_i32, %c0_i32_0 : i32, i32
  }
  func.func @transform_3(%arg0: i32) -> (i32, i32) {
    %c0_i32 = arith.constant 0 : i32
    %c0_i32_0 = arith.constant 0 : i32
    %c0_i32_1 = arith.constant 0 : i32
    return %c0_i32, %c0_i32_0 : i32, i32
  }
  func.func @transform_4(%arg0: i32) -> (i32, i32) {
    %c0_i32 = arith.constant 0 : i32
    %c0_i32_0 = arith.constant 0 : i32
    %c0_i32_1 = arith.constant 0 : i32
    return %c0_i32, %c0_i32_0 : i32, i32
  }
  func.func @transform_5(%arg0: i32) -> (i32, i32) {
    %c0_i32 = arith.constant 0 : i32
    %c0_i32_0 = arith.constant 0 : i32
    return %arg0, %c0_i32 : i32, i32
  }
}

</mosaic_0001>

<llo_original>
// kernel: feed_forward_block.1
$region0: #{feed_forward_block.1}
  #allocation0 [shape = 'u32[]', space=smem, size = 0x4, offset = 0x4, fixed_abs, tag = 'smem constant byte address 0x4 - core index']
  #allocation1 [shape = 'u32[144,128]{1,0:T(1,128)}', space=vmem, size = 0x12000, scoped, tag = 'internal scratch']
  %s0 = inlined_call_operand.vmem [shape: f32[16,128], index: 0, kind: input, shape index: {}]
  %s1 = inlined_call_operand.vmem [shape: f32[128,128], index: 1, kind: input, shape index: {}]
  %s2 = inlined_call_operand.vmem [shape: f32[1,128], index: 2, kind: input, shape index: {}]
  %s3 = inlined_call_operand.vmem [shape: f32[128,128], index: 3, kind: input, shape index: {}]
  %s4 = inlined_call_operand.vmem [shape: f32[1,128], index: 4, kind: input, shape index: {}]
  %s5 = inlined_call_operand.vmem [shape: f32[16,128], index: 5, kind: output, shape index: {}]
  %s6 = sld [smem:[#allocation0]]
  $region30: #{feed_forward_block.1} parent=0
    _
  %s8 = ssub.s32 1, %s6
  %s9 = scalar_select 0, %s8, %s6
  // Predicated region
  $region2: #{feed_forward_block.1} parent=0 // pred_check
    _
  $region3: #{feed_forward_block.1} parent=0 // pred_check_branch
    %11 = sbr.rel (0) target = $region5
  $region4: #{feed_forward_block.1} parent=0 // pred_region
    _
  $region5: #{feed_forward_block.1} parent=0 // pred_fallthru
    _
  // Predicated region
  $region6: #{feed_forward_block.1} parent=0 // pred_check
    _
  $region7: #{feed_forward_block.1} parent=0 // pred_check_branch
    %13 = sbr.rel (0) target = $region9
  $region8: #{feed_forward_block.1} parent=0 // pred_region
    _
  $region9: #{feed_forward_block.1} parent=0 // pred_fallthru
    _
  // Predicated region
  $region10: #{feed_forward_block.1} parent=0 // pred_check
    _
  $region11: #{feed_forward_block.1} parent=0 // pred_check_branch
    %15 = sbr.rel (0) target = $region13
  $region12: #{feed_forward_block.1} parent=0 // pred_region
    _
  $region13: #{feed_forward_block.1} parent=0 // pred_fallthru
    _
  // Predicated region
  $region14: #{feed_forward_block.1} parent=0 // pred_check
    _
  $region15: #{feed_forward_block.1} parent=0 // pred_check_branch
    %17 = sbr.rel (0) target = $region17
  $region16: #{feed_forward_block.1} parent=0 // pred_region
    _
  $region17: #{feed_forward_block.1} parent=0 // pred_fallthru
    _
  // Predicated region
  $region18: #{feed_forward_block.1} parent=0 // pred_check
    _
  $region19: #{feed_forward_block.1} parent=0 // pred_check_branch
    %19 = sbr.rel (0) target = $region21
  $region20: #{feed_forward_block.1} parent=0 // pred_region
    _
  $region21: #{feed_forward_block.1} parent=0 // pred_fallthru
    _
  %v20 = vld [vmem:[%s0] sm:$0xff]
  %v21 = vld [vmem:[%s0 + $0x8] sm:$0xff]
  %v22 = vld [vmem:[%s1] sm:$0xff]
  %v23 = vld [vmem:[%s1 + $0x8] sm:$0xff]
  %v24 = vld [vmem:[%s1 + $0x10] sm:$0xff]
  %v25 = vld [vmem:[%s1 + $0x18] sm:$0xff]
  %v26 = vld [vmem:[%s1 + $0x20] sm:$0xff]
  %v27 = vld [vmem:[%s1 + $0x28] sm:$0xff]
  %v28 = vld [vmem:[%s1 + $0x30] sm:$0xff]
  %v29 = vld [vmem:[%s1 + $0x38] sm:$0xff]
  %v30 = vld [vmem:[%s1 + $0x40] sm:$0xff]
  %v31 = vld [vmem:[%s1 + $0x48] sm:$0xff]
  %v32 = vld [vmem:[%s1 + $0x50] sm:$0xff]
  %v33 = vld [vmem:[%s1 + $0x58] sm:$0xff]
  %v34 = vld [vmem:[%s1 + $0x60] sm:$0xff]
  %v35 = vld [vmem:[%s1 + $0x68] sm:$0xff]
  %v36 = vld [vmem:[%s1 + $0x70] sm:$0xff]
  %v37 = vld [vmem:[%s1 + $0x78] sm:$0xff]
  %v38 = vld [vmem:[%s2] sm:$0x1]
  %v40 = vlaneseq
  %v41 = vshrl.u32 %v40, 7
  %v42 = vsub.s32 0, %v41
  %v43 = vrot.slane %v38, %v42
  %45 = vmatprep.subr.mxu0 0.0
  %46 = vmatpush1.msra.mxu0 %v37
  %47 = vmatprep.subr.mxu0 0.0
  %48 = vmatpush1.msra.mxu0 %v36
  %49 = vmatprep.subr.mxu0 0.0
  %50 = vmatpush1.msra.mxu0 %v35
  %51 = vmatprep.subr.mxu0 0.0
  %52 = vmatpush1.msra.mxu0 %v34
  %53 = vmatprep.subr.mxu0 0.0
  %54 = vmatpush1.msra.mxu0 %v33
  %55 = vmatprep.subr.mxu0 0.0
  %56 = vmatpush1.msra.mxu0 %v32
  %57 = vmatprep.subr.mxu0 0.0
  %58 = vmatpush1.msra.mxu0 %v31
  %59 = vmatprep.subr.mxu0 0.0
  %60 = vmatpush1.msra.mxu0 %v30
  %61 = vmatprep.subr.mxu0 0.0
  %62 = vmatpush1.msra.mxu0 %v29
  %63 = vmatprep.subr.mxu0 0.0
  %64 = vmatpush1.msra.mxu0 %v28
  %65 = vmatprep.subr.mxu0 0.0
  %66 = vmatpush1.msra.mxu0 %v27
  %67 = vmatprep.subr.mxu0 0.0
  %68 = vmatpush1.msra.mxu0 %v26
  %69 = vmatprep.subr.mxu0 0.0
  %70 = vmatpush1.msra.mxu0 %v25
  %71 = vmatprep.subr.mxu0 0.0
  %72 = vmatpush1.msra.mxu0 %v24
  %73 = vmatprep.subr.mxu0 0.0
  %74 = vmatpush1.msra.mxu0 %v23
  %75 = vmatprep.subr.mxu0 0.0
  %76 = vmatpush1.msra.mxu0 %v22
  %77 = vmatprep.subr.mxu0 0.0
  %78 = vmatpush2.msra.mxu0 0.0
  %79 = vmatprep.subr.mxu0 0.0
  %80 = vmatpush2.msra.mxu0 0.0
  %81 = vmatprep.subr.mxu0 0.0
  %82 = vmatpush2.msra.mxu0 0.0
  %83 = vmatprep.subr.mxu0 0.0
  %84 = vmatpush2.msra.mxu0 0.0
  %85 = vmatprep.subr.mxu0 0.0
  %86 = vmatpush2.msra.mxu0 0.0
  %87 = vmatprep.subr.mxu0 0.0
  %88 = vmatpush2.msra.mxu0 0.0
  %89 = vmatprep.subr.mxu0 0.0
  %90 = vmatpush2.msra.mxu0 0.0
  %91 = vmatprep.subr.mxu0 0.0
  %92 = vmatpush2.msra.mxu0 0.0
  %93 = vmatprep.subr.mxu0 0.0
  %94 = vmatpush2.msra.mxu0 0.0
  %95 = vmatprep.subr.mxu0 0.0
  %96 = vmatpush2.msra.mxu0 0.0
  %97 = vmatprep.subr.mxu0 0.0
  %98 = vmatpush2.msra.mxu0 0.0
  %99 = vmatprep.subr.mxu0 0.0
  %100 = vmatpush2.msra.mxu0 0.0
  %101 = vmatprep.subr.mxu0 0.0
  %102 = vmatpush2.msra.mxu0 0.0
  %103 = vmatprep.subr.mxu0 0.0
  %104 = vmatpush2.msra.mxu0 0.0
  %105 = vmatprep.subr.mxu0 0.0
  %106 = vmatpush2.msra.mxu0 0.0
  %107 = vmatprep.subr.mxu0 0.0
  %108 = vmatpush2.msra.mxu0 0.0
  %109 = vmatprep.mubr.f32.mxu0 0.0
  %110 = vmatmul.mubr.f32.gmra.mxu0 %v20
  %v111 = vpop.f32.mrf.mxu0
  %v112 = vadd.f32 %v43, %v111
  %v113 = vpop.f32.mrf.mxu0
  %114 = vmatprep.mubr.f32.mxu0 0.0
  %115 = vmatmul.mubr.f32.gmra.mxu0 %v21
  %v116 = vpop.f32.mrf.mxu0
  %v117 = vadd.f32 %v43, %v116
  %v118 = vpop.f32.mrf.mxu0
  %119 = vdwg.mxu0
  %v120 = vmax.f32 %v112, 0.0
  %v121 = vmax.f32 %v117, 0.0
  %v122 = vld [vmem:[%s3] sm:$0xff]
  %v123 = vld [vmem:[%s3 + $0x8] sm:$0xff]
  %v124 = vld [vmem:[%s3 + $0x10] sm:$0xff]
  %v125 = vld [vmem:[%s3 + $0x18] sm:$0xff]
  %v126 = vld [vmem:[%s3 + $0x20] sm:$0xff]
  %v127 = vld [vmem:[%s3 + $0x28] sm:$0xff]
  %v128 = vld [vmem:[%s3 + $0x30] sm:$0xff]
  %v129 = vld [vmem:[%s3 + $0x38] sm:$0xff]
  %v130 = vld [vmem:[%s3 + $0x40] sm:$0xff]
  %v131 = vld [vmem:[%s3 + $0x48] sm:$0xff]
  %v132 = vld [vmem:[%s3 + $0x50] sm:$0xff]
  %v133 = vld [vmem:[%s3 + $0x58] sm:$0xff]
  %v134 = vld [vmem:[%s3 + $0x60] sm:$0xff]
  %v135 = vld [vmem:[%s3 + $0x68] sm:$0xff]
  %v136 = vld [vmem:[%s3 + $0x70] sm:$0xff]
  %v137 = vld [vmem:[%s3 + $0x78] sm:$0xff]
  %v138 = vld [vmem:[%s4] sm:$0x1]
  %v140 = vlaneseq
  %v141 = vshrl.u32 %v140, 7
  %v142 = vsub.s32 0, %v141
  %v143 = vrot.slane %v138, %v142
  %145 = vmatprep.subr.mxu0 0.0
  %146 = vmatpush1.msra.mxu0 %v137
  %147 = vmatprep.subr.mxu0 0.0
  %148 = vmatpush1.msra.mxu0 %v136
  %149 = vmatprep.subr.mxu0 0.0
  %150 = vmatpush1.msra.mxu0 %v135
  %151 = vmatprep.subr.mxu0 0.0
  %152 = vmatpush1.msra.mxu0 %v134
  %153 = vmatprep.subr.mxu0 0.0
  %154 = vmatpush1.msra.mxu0 %v133
  %155 = vmatprep.subr.mxu0 0.0
  %156 = vmatpush1.msra.mxu0 %v132
  %157 = vmatprep.subr.mxu0 0.0
  %158 = vmatpush1.msra.mxu0 %v131
  %159 = vmatprep.subr.mxu0 0.0
  %160 = vmatpush1.msra.mxu0 %v130
  %161 = vmatprep.subr.mxu0 0.0
  %162 = vmatpush1.msra.mxu0 %v129
  %163 = vmatprep.subr.mxu0 0.0
  %164 = vmatpush1.msra.mxu0 %v128
  %165 = vmatprep.subr.mxu0 0.0
  %166 = vmatpush1.msra.mxu0 %v127
  %167 = vmatprep.subr.mxu0 0.0
  %168 = vmatpush1.msra.mxu0 %v126
  %169 = vmatprep.subr.mxu0 0.0
  %170 = vmatpush1.msra.mxu0 %v125
  %171 = vmatprep.subr.mxu0 0.0
  %172 = vmatpush1.msra.mxu0 %v124
  %173 = vmatprep.subr.mxu0 0.0
  %174 = vmatpush1.msra.mxu0 %v123
  %175 = vmatprep.subr.mxu0 0.0
  %176 = vmatpush1.msra.mxu0 %v122
  %177 = vmatprep.subr.mxu0 0.0
  %178 = vmatpush2.msra.mxu0 0.0
  %179 = vmatprep.subr.mxu0 0.0
  %180 = vmatpush2.msra.mxu0 0.0
  %181 = vmatprep.subr.mxu0 0.0
  %182 = vmatpush2.msra.mxu0 0.0
  %183 = vmatprep.subr.mxu0 0.0
  %184 = vmatpush2.msra.mxu0 0.0
  %185 = vmatprep.subr.mxu0 0.0
  %186 = vmatpush2.msra.mxu0 0.0
  %187 = vmatprep.subr.mxu0 0.0
  %188 = vmatpush2.msra.mxu0 0.0
  %189 = vmatprep.subr.mxu0 0.0
  %190 = vmatpush2.msra.mxu0 0.0
  %191 = vmatprep.subr.mxu0 0.0
  %192 = vmatpush2.msra.mxu0 0.0
  %193 = vmatprep.subr.mxu0 0.0
  %194 = vmatpush2.msra.mxu0 0.0
  %195 = vmatprep.subr.mxu0 0.0
  %196 = vmatpush2.msra.mxu0 0.0
  %197 = vmatprep.subr.mxu0 0.0
  %198 = vmatpush2.msra.mxu0 0.0
  %199 = vmatprep.subr.mxu0 0.0
  %200 = vmatpush2.msra.mxu0 0.0
  %201 = vmatprep.subr.mxu0 0.0
  %202 = vmatpush2.msra.mxu0 0.0
  %203 = vmatprep.subr.mxu0 0.0
  %204 = vmatpush2.msra.mxu0 0.0
  %205 = vmatprep.subr.mxu0 0.0
  %206 = vmatpush2.msra.mxu0 0.0
  %207 = vmatprep.subr.mxu0 0.0
  %208 = vmatpush2.msra.mxu0 0.0
  %209 = vmatprep.mubr.f32.mxu0 0.0
  %210 = vmatmul.mubr.f32.gmra.mxu0 %v120
  %v211 = vpop.f32.mrf.mxu0
  %v212 = vadd.f32 %v143, %v211
  %v213 = vpop.f32.mrf.mxu0
  %214 = vmatprep.mubr.f32.mxu0 0.0
  %215 = vmatmul.mubr.f32.gmra.mxu0 %v121
  %v216 = vpop.f32.mrf.mxu0
  %v217 = vadd.f32 %v143, %v216
  %v218 = vpop.f32.mrf.mxu0
  %219 = vdwg.mxu0
  %220 = vst [vmem:[%s5] sm:$0xff] %v212
  %221 = vst [vmem:[%s5 + $0x8] sm:$0xff] %v217
  // Predicated region
  $region22: #{feed_forward_block.1} parent=0 // pred_check
    _
  $region23: #{feed_forward_block.1} parent=0 // pred_check_branch
    %223 = sbr.rel (0) target = $region25
  $region24: #{feed_forward_block.1} parent=0 // pred_region
    _
  $region25: #{feed_forward_block.1} parent=0 // pred_fallthru
    _
  // Predicated region
  $region26: #{feed_forward_block.1} parent=0 // pred_check
    _
  $region27: #{feed_forward_block.1} parent=0 // pred_check_branch
    %225 = sbr.rel (0) target = $region29
  $region28: #{feed_forward_block.1} parent=0 // pred_region
    _
  $region29: #{feed_forward_block.1} parent=0 // pred_fallthru
    _

</llo_original>
